<compile_context>
chip_gen: v6e
topology: v6e:2x2x1
jax: 0.10.0
libtpu: 0.0.40
codegen_flags: <defaults>
</compile_context>

<pallas_src>
import numpy as np
import jax
import jax.numpy as jnp
from jax.experimental import pallas as pl
from jax.experimental.pallas import tpu as pltpu


TILE_N = 256  # output rows per grid step (perf review: 256-512 reaches ~85% of HBM roofline)


def _round_up(x, m):
    return (x + m - 1) // m * m


def pca_embed_kernel(idx_ref, w_ref, mean_ref, out_ref):
    # idx_ref  : [TN, 1] int32 (VMEM) -- indices for this tile
    # w_ref    : [V, D]  bf16  (VMEM) -- fused table coefficients @ principal_components.T
    # mean_ref : [1, D]  f32   (VMEM) -- embedding mean
    # out_ref  : [TN, D]              -- output tile (f32 or bf16)
    tn = out_ref.shape[0]
    v = w_ref.shape[0]

    idx = idx_ref[...]                                              # [TN, 1]
    vocab_iota = jax.lax.broadcasted_iota(jnp.int32, (tn, v), 1)    # [TN, V]
    one_hot = (vocab_iota == idx).astype(w_ref.dtype)               # [TN, V] bf16

    # Single MXU pass: exact bf16 row-select of W with f32 accumulation.
    emb = jnp.dot(one_hot, w_ref[...],
                  preferred_element_type=jnp.float32)               # [TN, D] f32
    out_ref[...] = (emb + mean_ref[...]).astype(out_ref.dtype)


def prepare_pca_weights(coefficients, principal_components):
    """One-time weight prep: fuse the two matmuls into W = coeff @ pct.T (f32), round once to bf16."""
    w_f32 = coefficients.astype(jnp.float32) @ principal_components.astype(jnp.float32).T  # [V, D]
    return w_f32.astype(jnp.bfloat16)


def _vmem_limit_bytes(v, d, tile_n):
    d_pad = _round_up(d, 128)
    w_bytes = _round_up(v, 16) * d_pad * 2            # single-buffered bf16 table
    mean_bytes = 8 * d_pad * 4                        # [1, D] f32, sublane-padded
    idx_bytes = 2 * _round_up(tile_n, 8) * 128 * 4    # double-buffered [TN, 1] int32 (lane-padded)
    out_bytes = 2 * _round_up(tile_n, 8) * d_pad * 4  # double-buffered output tile (f32 upper bound)
    need = w_bytes + mean_bytes + idx_bytes + out_bytes
    # 2x headroom for the one-hot intermediate / compiler scratch; never below the 32 MiB default.
    return int(max(2 * need + (2 << 20), 32 << 20))


def pca_embedding_forward(indices, w_bf16, embedding_mean, *,
                          tile_n=TILE_N, out_dtype=jnp.float32):
    """indices: [N] int; returns [N, D] in out_dtype (f32 by default, matching the torch module)."""
    n = indices.shape[0]
    v, d = w_bf16.shape

    # Largest tile <= requested that still yields >=2 grid steps when N allows it
    # (so the "parallel" axis can split across a v7x megacore); floor of 128 rows.
    tile_n = int(min(tile_n, max(128, _round_up(pl.cdiv(n, 2), 8))))
    n_tiles = pl.cdiv(n, tile_n)
    n_pad = n_tiles * tile_n

    # Cheap pad (copy) instead of a scatter; padded rows use index 0 and are sliced off below.
    idx2d = jnp.pad(indices.astype(jnp.int32), (0, n_pad - n))[:, None]    # [n_pad, 1]

    out = pl.pallas_call(
        pca_embed_kernel,
        out_shape=jax.ShapeDtypeStruct((n_pad, d), out_dtype),
        grid=(n_tiles,),
        in_specs=[
            pl.BlockSpec((tile_n, 1), lambda i: (i, 0)),                  # indices tile
            pl.BlockSpec((v, d), lambda i: (0, 0),
                         pipeline_mode=pl.Buffered(1)),                   # fused W table (resident)
            pl.BlockSpec((1, d), lambda i: (0, 0),
                         pipeline_mode=pl.Buffered(1)),                   # embedding_mean (resident)
        ],
        out_specs=pl.BlockSpec((tile_n, d), lambda i: (i, 0)),
        compiler_params=pltpu.CompilerParams(
            dimension_semantics=("parallel",),                            # megacore split on v7x
            vmem_limit_bytes=_vmem_limit_bytes(v, d, tile_n)),
    )(idx2d, w_bf16, embedding_mean)
    return out[:n]


def build_pca_embedding_params(key, vocab_size, embed_dim, num_components):
    """Deterministic re-implementation of PCAEmbedding.__init__ (synthetic weights)."""
    base_embedding = jax.random.normal(key, (vocab_size, embed_dim), dtype=jnp.float32)
    base_np = np.asarray(base_embedding, dtype=np.float32)
    mean_np = base_np.mean(axis=0, keepdims=True)                      # [1, D]
    data_np = base_np - mean_np                                        # [V, D]
    # torch.pca_lowrank ~ truncated SVD of the centered data; exact SVD here (host-side init).
    _, _, vt = np.linalg.svd(data_np, full_matrices=False)
    principal_components = vt[:num_components].T.astype(np.float32)    # [D, K]
    coefficients = data_np @ principal_components                      # [V, K]
    return (jnp.asarray(coefficients),
            jnp.asarray(principal_components),
            jnp.asarray(mean_np))


if __name__ == "__main__":
    VOCAB, EMBED_DIM, NUM_COMPONENTS, NUM_INDICES = 32, 128, 8, 512

    key = jax.random.PRNGKey(0)
    k_emb, k_idx = jax.random.split(key)

    coefficients, principal_components, embedding_mean = build_pca_embedding_params(
        k_emb, VOCAB, EMBED_DIM, NUM_COMPONENTS)
    indices = jax.random.randint(k_idx, (NUM_INDICES,), 0, VOCAB, dtype=jnp.int32)

    # One-time weight prep: fused [V, D] bf16 table (computed in f32, rounded once).
    w_bf16 = prepare_pca_weights(coefficients, principal_components)

    out = pca_embedding_forward(indices, w_bf16, embedding_mean)
    out = jax.block_until_ready(out)

    # Pure-JAX reference of the PyTorch forward (f32 weights).
    ref = coefficients[indices] @ principal_components.T + embedding_mean
    # W is rounded once to bf16: validate with tolerance covering bf16 weight rounding.
    np.testing.assert_allclose(np.asarray(out), np.asarray(ref), rtol=5e-2, atol=5e-2)

    print("KERNEL_OK")
</pallas_src>

<mosaic_0001>
module attributes {stable_mosaic.version = 11 : i64} {
  func.func @pca_embed_kernel(%arg0: i32, %arg1: memref<256x1xi32, #tpu.memory_space<vmem>>, %arg2: memref<32x128xbf16, #tpu.memory_space<vmem>>, %arg3: memref<1x128xf32, #tpu.memory_space<vmem>>, %arg4: memref<256x128xf32, #tpu.memory_space<vmem>>) attributes {dimension_semantics = [#tpu.dimension_semantics<parallel>], iteration_bounds = array<i64: 2>, scalar_prefetch = 0 : i64, scratch_operands = 0 : i64, tpu.core_type = #tpu.core_type<tc>, window_params = [{transform_indices = @transform_0, window_bounds = array<i64: 256, 1>}, {pipeline_mode = #tpu.pipeline_mode<synchronous>, transform_indices = @transform_1, window_bounds = array<i64: 32, 128>}, {pipeline_mode = #tpu.pipeline_mode<synchronous>, transform_indices = @transform_2, window_bounds = array<i64: 1, 128>}, {transform_indices = @transform_3, window_bounds = array<i64: 256, 128>}]} {
    %c0 = arith.constant 0 : index
    %c0_0 = arith.constant 0 : index
    %0 = vector.load %arg1[%c0, %c0_0] : memref<256x1xi32, #tpu.memory_space<vmem>>, vector<256x1xi32>
    %1 = tpu.iota {dimensions = array<i32: 1>} : vector<256x32xi32>
    %2 = vector.broadcast %0 : vector<256x1xi32> to vector<256x32xi32>
    %3 = arith.cmpi eq, %1, %2 : vector<256x32xi32>
    %4 = arith.extui %3 : vector<256x32xi1> to vector<256x32xi32>
    %5 = arith.sitofp %4 : vector<256x32xi32> to vector<256x32xf32>
    %6 = arith.truncf %5 : vector<256x32xf32> to vector<256x32xbf16>
    %c0_1 = arith.constant 0 : index
    %c0_2 = arith.constant 0 : index
    %7 = vector.load %arg2[%c0_1, %c0_2] : memref<32x128xbf16, #tpu.memory_space<vmem>>, vector<32x128xbf16>
    %cst = arith.constant dense<0.000000e+00> : vector<256x128xf32>
    %8 = tpu.matmul %6, %7, %cst {dimension_numbers = #tpu.dot_dimension_numbers<[1], [0], [0], [1], [0, 0, 1, 1], [], []>} : vector<256x32xbf16>, vector<32x128xbf16>, vector<256x128xf32> -> vector<256x128xf32>
    %c0_3 = arith.constant 0 : index
    %c0_4 = arith.constant 0 : index
    %9 = vector.load %arg3[%c0_3, %c0_4] : memref<1x128xf32, #tpu.memory_space<vmem>>, vector<1x128xf32>
    %10 = vector.broadcast %9 : vector<1x128xf32> to vector<256x128xf32>
    %11 = arith.addf %8, %10 : vector<256x128xf32>
    %c0_5 = arith.constant 0 : index
    %c0_6 = arith.constant 0 : index
    %12 = vector.load %arg4[%c0_5, %c0_6] : memref<256x128xf32, #tpu.memory_space<vmem>>, vector<256x128xf32>
    tpu.vector_store %arg4[%c0_5, %c0_6], %11 {strides = array<i32>} : memref<256x128xf32, #tpu.memory_space<vmem>>, vector<256x128xf32>,
    return
  }
  func.func @transform_0(%arg0: i32) -> (i32, i32) {
    %c0_i32 = arith.constant 0 : i32
    %c0_i32_0 = arith.constant 0 : i32
    return %arg0, %c0_i32 : i32, i32
  }
  func.func @transform_1(%arg0: i32) -> (i32, i32) {
    %c0_i32 = arith.constant 0 : i32
    %c0_i32_0 = arith.constant 0 : i32
    %c0_i32_1 = arith.constant 0 : i32
    return %c0_i32, %c0_i32_0 : i32, i32
  }
  func.func @transform_2(%arg0: i32) -> (i32, i32) {
    %c0_i32 = arith.constant 0 : i32
    %c0_i32_0 = arith.constant 0 : i32
    %c0_i32_1 = arith.constant 0 : i32
    return %c0_i32, %c0_i32_0 : i32, i32
  }
  func.func @transform_3(%arg0: i32) -> (i32, i32) {
    %c0_i32 = arith.constant 0 : i32
    %c0_i32_0 = arith.constant 0 : i32
    return %arg0, %c0_i32 : i32, i32
  }
}

</mosaic_0001>

<llo_original>
// kernel: tpu_custom_call.1
$region0: #{tpu_custom_call.1}
  #allocation0 [shape = 'u32[]', space=smem, size = 0x4, offset = 0x4, fixed_abs, tag = 'smem constant byte address 0x4 - core index']
  #allocation1 [shape = 'u32[144,128]{1,0:T(1,128)}', space=vmem, size = 0x12000, scoped, tag = 'internal scratch']
  %s0 = inlined_call_operand.vmem [shape: s32[512,1], index: 0, kind: input, shape index: {}]
  %s1 = inlined_call_operand.vmem [shape: bf16[32,128], index: 1, kind: input, shape index: {}]
  %s2 = inlined_call_operand.vmem [shape: f32[1,128], index: 2, kind: input, shape index: {}]
  %s3 = inlined_call_operand.hbm [shape: f32[512,128], index: 3, kind: output, shape index: {}]
  %s4 = sld [smem:[#allocation0]]
  $region45: #{tpu_custom_call.1} parent=0
    _
  %s6 = ssub.s32 1, %s4
  %s7 = scalar_select 0, %s6, %s4
  $region1: #{tpu_custom_call.1} parent=0
    #allocation2 [shape = 'u8[262144]{0}', space=vmem, size = 0x40000, scoped, tag = 'output window, operand 0']
    #allocation3 [shape = 's32[2]{0}', space=sflag, size = 0x8, scoped, tag = 'scoped memory for tpu_custom_call.1']
    %8 = vsyncpa [#allocation3], 0
    %s9 = scalar_lea.sflag [#allocation3], 1
    %10 = vsyncpa %s9, 0
    loop: start=0, step=1, limit=4
    $region2: #{tpu_custom_call.1} parent=1 // loop_pre_header
      _
    $region3: #{tpu_custom_call.1} parent=1 // loop_header
      %s12 = sphi 0, %s16
      %p13 = scmp.ge.s32.totalorder %s12, 4
      %s22 = sphi 0, %s24
      %s25 = sphi 0, %s22
      %s26 = sphi 0, %s25
      %s42 = sphi 0, %s26
      %s46 = sphi 0, %s46
      %s48 = sphi 0, %s46
      %s49 = sphi 0, %s48
      %s63 = sphi 0, %s49
      %s67 = sphi 0, %s67
      %s69 = sphi 0, %s67
      %s70 = sphi 0, %s69
      %s84 = sphi 0, %s70
      %s90 = sphi 0, %s92
      %s93 = sphi 0, %s90
      %s94 = sphi 0, %s93
      %s110 = sphi 0, %s94
    $region4: #{tpu_custom_call.1} parent=1 // loop_header_branch
      %15 = sbr.rel (%p13) target = $region8
    $region5: #{tpu_custom_call.1} parent=1 // loop_body
      %s17 = ssub.s32 %s12, 1
      %s18 = ssub.s32 %s12, 2
      %s19 = sadd.s32 %s12, 1
      %s20 = ssub.s32 %s12, %s19
      %p21 = scmp.eq.s32.totalorder %s20, 0
      %s23 = sadd.s32 %s22, 1
      %s24 = scalar_select %p21, %s22, %s23
      %p27 = pneg %p21
      %p28 = scmp.eq.s32.totalorder %s12, 1
      %p29 = por %p27, %p28
      %p30 = scmp.ne.s32.totalorder %s22, %s25
      %p31 = scmp.eq.s32.totalorder %s12, 0
      %p32 = por %p30, %p31
      %p33 = scmp.ne.s32.totalorder %s22, %s25
      %p34 = scmp.eq.s32.totalorder %s17, 1
      %p35 = por %p33, %p34
      %p36 = scmp.ne.s32.totalorder %s25, %s26
      %p37 = scmp.eq.s32.totalorder %s17, 0
      %p38 = por %p36, %p37
      %p39 = scmp.ne.s32.totalorder %s25, %s26
      %p40 = scmp.eq.s32.totalorder %s18, 1
      %p41 = por %p39, %p40
      %p43 = scmp.ne.s32.totalorder %s26, %s42
      %p44 = scmp.eq.s32.totalorder %s18, 0
      %p45 = por %p43, %p44
      %s47 = sadd.s32 %s46, 1
      %p50 = scmp.eq.s32.totalorder %s12, 1
      %p51 = scmp.ne.s32.totalorder %s46, %s48
      %p52 = scmp.eq.s32.totalorder %s12, 0
      %p53 = por %p51, %p52
      %p54 = scmp.ne.s32.totalorder %s46, %s48
      %p55 = scmp.eq.s32.totalorder %s17, 1
      %p56 = por %p54, %p55
      %p57 = scmp.ne.s32.totalorder %s48, %s49
      %p58 = scmp.eq.s32.totalorder %s17, 0
      %p59 = por %p57, %p58
      %p60 = scmp.ne.s32.totalorder %s48, %s49
      %p61 = scmp.eq.s32.totalorder %s18, 1
      %p62 = por %p60, %p61
      %p64 = scmp.ne.s32.totalorder %s49, %s63
      %p65 = scmp.eq.s32.totalorder %s18, 0
      %p66 = por %p64, %p65
      %s68 = sadd.s32 %s67, 1
      %p71 = scmp.eq.s32.totalorder %s12, 1
      %p72 = scmp.ne.s32.totalorder %s67, %s69
      %p73 = scmp.eq.s32.totalorder %s12, 0
      %p74 = por %p72, %p73
      %p75 = scmp.ne.s32.totalorder %s67, %s69
      %p76 = scmp.eq.s32.totalorder %s17, 1
      %p77 = por %p75, %p76
      %p78 = scmp.ne.s32.totalorder %s69, %s70
      %p79 = scmp.eq.s32.totalorder %s17, 0
      %p80 = por %p78, %p79
      %p81 = scmp.ne.s32.totalorder %s69, %s70
      %p82 = scmp.eq.s32.totalorder %s18, 1
      %p83 = por %p81, %p82
      %p85 = scmp.ne.s32.totalorder %s70, %s84
      %p86 = scmp.eq.s32.totalorder %s18, 0
      %p87 = por %p85, %p86
      %s88 = ssub.s32 %s12, %s19
      %p89 = scmp.eq.s32.totalorder %s88, 0
      %s91 = sadd.s32 %s90, 1
      %s92 = scalar_select %p89, %s90, %s91
      %p95 = pneg %p89
      %p96 = scmp.eq.s32.totalorder %s12, 1
      %p97 = por %p95, %p96
      %p98 = scmp.ne.s32.totalorder %s90, %s93
      %p99 = scmp.eq.s32.totalorder %s12, 0
      %p100 = por %p98, %p99
      %p101 = scmp.ne.s32.totalorder %s90, %s93
      %p102 = scmp.eq.s32.totalorder %s17, 1
      %p103 = por %p101, %p102
      %p104 = scmp.ne.s32.totalorder %s93, %s94
      %p105 = scmp.eq.s32.totalorder %s17, 0
      %p106 = por %p104, %p105
      %p107 = scmp.ne.s32.totalorder %s93, %s94
      %p108 = scmp.eq.s32.totalorder %s18, 1
      %p109 = por %p107, %p108
      %p111 = scmp.ne.s32.totalorder %s94, %s110
      %p112 = scmp.eq.s32.totalorder %s18, 0
      %p113 = por %p111, %p112
      %p114 = scmp.le.s32.totalorder 1, %s12
      %p115 = scmp.lt.s32.totalorder %s12, 3
      %p116 = pnand %p114, %p115
      %p117 = pneg %p116
      // Predicated region
      $region9: #{tpu_custom_call.1} parent=5 // pred_check
        _
      $region10: #{tpu_custom_call.1} parent=5 // pred_check_branch
        %119 = sbr.rel (%p116) target = $region12
      $region11: #{tpu_custom_call.1} parent=5 // pred_region
        %s120 = ssub.s32 %s12, 1
        // Predicated region
        $region13: #{tpu_custom_call.1} parent=11 // pred_check
          %p121 = pneg %p59
        $region14: #{tpu_custom_call.1} parent=11 // pred_check_branch
          %123 = sbr.rel (%p121) target = $region16
        $region15: #{tpu_custom_call.1} parent=11 // pred_region
          _
        $region16: #{tpu_custom_call.1} parent=11 // pred_fallthru
          _
        // Predicated region
        $region17: #{tpu_custom_call.1} parent=11 // pred_check
          %p124 = pneg %p80
        $region18: #{tpu_custom_call.1} parent=11 // pred_check_branch
          %126 = sbr.rel (%p124) target = $region20
        $region19: #{tpu_custom_call.1} parent=11 // pred_region
          _
        $region20: #{tpu_custom_call.1} parent=11 // pred_fallthru
          _
      $region12: #{tpu_custom_call.1} parent=5 // pred_fallthru
        _
      %p127 = scmp.lt.s32.totalorder %s12, 2
      // Predicated region
      $region21: #{tpu_custom_call.1} parent=5 // pred_check
        %p128 = pneg %p127
      $region22: #{tpu_custom_call.1} parent=5 // pred_check_branch
        %130 = sbr.rel (%p128) target = $region24
      $region23: #{tpu_custom_call.1} parent=5 // pred_region
        // Predicated region
        $region25: #{tpu_custom_call.1} parent=23 // pred_check
          %p131 = pneg %p32
        $region26: #{tpu_custom_call.1} parent=23 // pred_check_branch
          %133 = sbr.rel (%p131) target = $region28
        $region27: #{tpu_custom_call.1} parent=23 // pred_region
          %s134 = smul.u32 32, %s12
          %p135 = scmp.lt.s32.totalorder %s134, 63
          %s136 = scalar_select %p135, %s134, 63
          %s137 = smul.addr %s136, 8
          %s138 = scalar_lea.vmem %s0, %s137
          %s139 = smul.u32 32, %s12
        $region28: #{tpu_custom_call.1} parent=23 // pred_fallthru
          _
      $region24: #{tpu_custom_call.1} parent=5 // pred_fallthru
        _
      %p140 = scmp.le.s32.totalorder 1, %s12
      %p141 = scmp.lt.s32.totalorder %s12, 3
      %p142 = pnand %p140, %p141
      %p143 = pneg %p142
      // Predicated region
      $region29: #{tpu_custom_call.1} parent=5 // pred_check
        _
      $region30: #{tpu_custom_call.1} parent=5 // pred_check_branch
        %145 = sbr.rel (%p142) target = $region32
      $region31: #{tpu_custom_call.1} parent=5 // pred_region
        %s146 = ssub.s32 %s12, 1
        %s147 = smul.u32 32, %s17
        %p148 = scmp.lt.s32.totalorder %s147, 63
        %s149 = scalar_select %p148, %s147, 63
        %s150 = smul.addr %s149, 8
        %s151 = scalar_lea.vmem %s0, %s150
        %p152 = pneg %p38
        %p153 = pneg %p35
        %p154 = pneg %p59
        %p155 = pneg %p56
        %p156 = pneg %p80
        %p157 = pneg %p77
        %p158 = pneg %p106
        %p159 = pneg %p103
        %s160 = sand.u32 %s93, 1
        %s161 = scalar_lea.sflag [#allocation3], %s160
        %s162 = sand.u32 %s93, 1
        %s163 = smul.addr %s162, 256
        %s164 = scalar_lea.vmem [#allocation2], %s163
        %s165 = smul.u32 32, %s17
        %p166 = scmp.lt.s32.totalorder %s165, 63
        %s167 = scalar_select %p166, %s165, 63
        %s168 = smul.addr %s167, 8
        %s169 = scalar_lea.vmem %s0, %s168
        %s170 = smul.u32 32, %s17
        %s171 = smul.u32 32, %s17
        %v173 = vld [vmem:[%s169] sm:$0xff]
        %v174 = vld [vmem:[%s169 + $0x8] sm:$0xff]
        %v175 = vld [vmem:[%s169 + $0x10] sm:$0xff]
        %v176 = vld [vmem:[%s169 + $0x18] sm:$0xff]
        %v177 = vld [vmem:[%s169 + $0x20] sm:$0xff]
        %v178 = vld [vmem:[%s169 + $0x28] sm:$0xff]
        %v179 = vld [vmem:[%s169 + $0x30] sm:$0xff]
        %v180 = vld [vmem:[%s169 + $0x38] sm:$0xff]
        %v181 = vld [vmem:[%s169 + $0x40] sm:$0xff]
        %v182 = vld [vmem:[%s169 + $0x48] sm:$0xff]
        %v183 = vld [vmem:[%s169 + $0x50] sm:$0xff]
        %v184 = vld [vmem:[%s169 + $0x58] sm:$0xff]
        %v185 = vld [vmem:[%s169 + $0x60] sm:$0xff]
        %v186 = vld [vmem:[%s169 + $0x68] sm:$0xff]
        %v187 = vld [vmem:[%s169 + $0x70] sm:$0xff]
        %v188 = vld [vmem:[%s169 + $0x78] sm:$0xff]
        %v189 = vld [vmem:[%s169 + $0x80] sm:$0xff]
        %v190 = vld [vmem:[%s169 + $0x88] sm:$0xff]
        %v191 = vld [vmem:[%s169 + $0x90] sm:$0xff]
        %v192 = vld [vmem:[%s169 + $0x98] sm:$0xff]
        %v193 = vld [vmem:[%s169 + $0xa0] sm:$0xff]
        %v194 = vld [vmem:[%s169 + $0xa8] sm:$0xff]
        %v195 = vld [vmem:[%s169 + $0xb0] sm:$0xff]
        %v196 = vld [vmem:[%s169 + $0xb8] sm:$0xff]
        %v197 = vld [vmem:[%s169 + $0xc0] sm:$0xff]
        %v198 = vld [vmem:[%s169 + $0xc8] sm:$0xff]
        %v199 = vld [vmem:[%s169 + $0xd0] sm:$0xff]
        %v200 = vld [vmem:[%s169 + $0xd8] sm:$0xff]
        %v201 = vld [vmem:[%s169 + $0xe0] sm:$0xff]
        %v202 = vld [vmem:[%s169 + $0xe8] sm:$0xff]
        %v203 = vld [vmem:[%s169 + $0xf0] sm:$0xff]
        %v204 = vld [vmem:[%s169 + $0xf8] sm:$0xff]
        %v205 = vlaneseq
        %v206 = vand.u32 %v205, 127
        %207 = vset.pattern.permute.xlu0 0
        %208 = vperm.xlu0 %207, %v173
        %v209 = vpop.permute.xlu0 %208
        %210 = vset.pattern.permute.xlu0 0
        %211 = vperm.xlu0 %210, %v174
        %v212 = vpop.permute.xlu0 %211
        %213 = vset.pattern.permute.xlu0 0
        %214 = vperm.xlu0 %213, %v175
        %v215 = vpop.permute.xlu0 %214
        %216 = vset.pattern.permute.xlu0 0
        %217 = vperm.xlu0 %216, %v176
        %v218 = vpop.permute.xlu0 %217
        %219 = vset.pattern.permute.xlu0 0
        %220 = vperm.xlu0 %219, %v177
        %v221 = vpop.permute.xlu0 %220
        %222 = vset.pattern.permute.xlu0 0
        %223 = vperm.xlu0 %222, %v178
        %v224 = vpop.permute.xlu0 %223
        %225 = vset.pattern.permute.xlu0 0
        %226 = vperm.xlu0 %225, %v179
        %v227 = vpop.permute.xlu0 %226
        %228 = vset.pattern.permute.xlu0 0
        %229 = vperm.xlu0 %228, %v180
        %v230 = vpop.permute.xlu0 %229
        %231 = vset.pattern.permute.xlu0 0
        %232 = vperm.xlu0 %231, %v181
        %v233 = vpop.permute.xlu0 %232
        %234 = vset.pattern.permute.xlu0 0
        %235 = vperm.xlu0 %234, %v182
        %v236 = vpop.permute.xlu0 %235
        %237 = vset.pattern.permute.xlu0 0
        %238 = vperm.xlu0 %237, %v183
        %v239 = vpop.permute.xlu0 %238
        %240 = vset.pattern.permute.xlu0 0
        %241 = vperm.xlu0 %240, %v184
        %v242 = vpop.permute.xlu0 %241
        %243 = vset.pattern.permute.xlu0 0
        %244 = vperm.xlu0 %243, %v185
        %v245 = vpop.permute.xlu0 %244
        %246 = vset.pattern.permute.xlu0 0
        %247 = vperm.xlu0 %246, %v186
        %v248 = vpop.permute.xlu0 %247
        %249 = vset.pattern.permute.xlu0 0
        %250 = vperm.xlu0 %249, %v187
        %v251 = vpop.permute.xlu0 %250
        %252 = vset.pattern.permute.xlu0 0
        %253 = vperm.xlu0 %252, %v188
        %v254 = vpop.permute.xlu0 %253
        %255 = vset.pattern.permute.xlu0 0
        %256 = vperm.xlu0 %255, %v189
        %v257 = vpop.permute.xlu0 %256
        %258 = vset.pattern.permute.xlu0 0
        %259 = vperm.xlu0 %258, %v190
        %v260 = vpop.permute.xlu0 %259
        %261 = vset.pattern.permute.xlu0 0
        %262 = vperm.xlu0 %261, %v191
        %v263 = vpop.permute.xlu0 %262
        %264 = vset.pattern.permute.xlu0 0
        %265 = vperm.xlu0 %264, %v192
        %v266 = vpop.permute.xlu0 %265
        %267 = vset.pattern.permute.xlu0 0
        %268 = vperm.xlu0 %267, %v193
        %v269 = vpop.permute.xlu0 %268
        %270 = vset.pattern.permute.xlu0 0
        %271 = vperm.xlu0 %270, %v194
        %v272 = vpop.permute.xlu0 %271
        %273 = vset.pattern.permute.xlu0 0
        %274 = vperm.xlu0 %273, %v195
        %v275 = vpop.permute.xlu0 %274
        %276 = vset.pattern.permute.xlu0 0
        %277 = vperm.xlu0 %276, %v196
        %v278 = vpop.permute.xlu0 %277
        %279 = vset.pattern.permute.xlu0 0
        %280 = vperm.xlu0 %279, %v197
        %v281 = vpop.permute.xlu0 %280
        %282 = vset.pattern.permute.xlu0 0
        %283 = vperm.xlu0 %282, %v198
        %v284 = vpop.permute.xlu0 %283
        %285 = vset.pattern.permute.xlu0 0
        %286 = vperm.xlu0 %285, %v199
        %v287 = vpop.permute.xlu0 %286
        %288 = vset.pattern.permute.xlu0 0
        %289 = vperm.xlu0 %288, %v200
        %v290 = vpop.permute.xlu0 %289
        %291 = vset.pattern.permute.xlu0 0
        %292 = vperm.xlu0 %291, %v201
        %v293 = vpop.permute.xlu0 %292
        %294 = vset.pattern.permute.xlu0 0
        %295 = vperm.xlu0 %294, %v202
        %v296 = vpop.permute.xlu0 %295
        %297 = vset.pattern.permute.xlu0 0
        %298 = vperm.xlu0 %297, %v203
        %v299 = vpop.permute.xlu0 %298
        %300 = vset.pattern.permute.xlu0 0
        %301 = vperm.xlu0 %300, %v204
        %v302 = vpop.permute.xlu0 %301
        %vm303 = vcmp.eq.s32.totalorder %v206, %v209
        %vm304 = vcmp.eq.s32.totalorder %v206, %v212
        %vm305 = vcmp.eq.s32.totalorder %v206, %v215
        %vm306 = vcmp.eq.s32.totalorder %v206, %v218
        %vm307 = vcmp.eq.s32.totalorder %v206, %v221
        %vm308 = vcmp.eq.s32.totalorder %v206, %v224
        %vm309 = vcmp.eq.s32.totalorder %v206, %v227
        %vm310 = vcmp.eq.s32.totalorder %v206, %v230
        %vm311 = vcmp.eq.s32.totalorder %v206, %v233
        %vm312 = vcmp.eq.s32.totalorder %v206, %v236
        %vm313 = vcmp.eq.s32.totalorder %v206, %v239
        %vm314 = vcmp.eq.s32.totalorder %v206, %v242
        %vm315 = vcmp.eq.s32.totalorder %v206, %v245
        %vm316 = vcmp.eq.s32.totalorder %v206, %v248
        %vm317 = vcmp.eq.s32.totalorder %v206, %v251
        %vm318 = vcmp.eq.s32.totalorder %v206, %v254
        %vm319 = vcmp.eq.s32.totalorder %v206, %v257
        %vm320 = vcmp.eq.s32.totalorder %v206, %v260
        %vm321 = vcmp.eq.s32.totalorder %v206, %v263
        %vm322 = vcmp.eq.s32.totalorder %v206, %v266
        %vm323 = vcmp.eq.s32.totalorder %v206, %v269
        %vm324 = vcmp.eq.s32.totalorder %v206, %v272
        %vm325 = vcmp.eq.s32.totalorder %v206, %v275
        %vm326 = vcmp.eq.s32.totalorder %v206, %v278
        %vm327 = vcmp.eq.s32.totalorder %v206, %v281
        %vm328 = vcmp.eq.s32.totalorder %v206, %v284
        %vm329 = vcmp.eq.s32.totalorder %v206, %v287
        %vm330 = vcmp.eq.s32.totalorder %v206, %v290
        %vm331 = vcmp.eq.s32.totalorder %v206, %v293
        %vm332 = vcmp.eq.s32.totalorder %v206, %v296
        %vm333 = vcmp.eq.s32.totalorder %v206, %v299
        %vm334 = vcmp.eq.s32.totalorder %v206, %v302
        %v335 = vsel %vm303, 1, 0
        %v336 = vsel %vm304, 1, 0
        %v337 = vsel %vm305, 1, 0
        %v338 = vsel %vm306, 1, 0
        %v339 = vsel %vm307, 1, 0
        %v340 = vsel %vm308, 1, 0
        %v341 = vsel %vm309, 1, 0
        %v342 = vsel %vm310, 1, 0
        %v343 = vsel %vm311, 1, 0
        %v344 = vsel %vm312, 1, 0
        %v345 = vsel %vm313, 1, 0
        %v346 = vsel %vm314, 1, 0
        %v347 = vsel %vm315, 1, 0
        %v348 = vsel %vm316, 1, 0
        %v349 = vsel %vm317, 1, 0
        %v350 = vsel %vm318, 1, 0
        %v351 = vsel %vm319, 1, 0
        %v352 = vsel %vm320, 1, 0
        %v353 = vsel %vm321, 1, 0
        %v354 = vsel %vm322, 1, 0
        %v355 = vsel %vm323, 1, 0
        %v356 = vsel %vm324, 1, 0
        %v357 = vsel %vm325, 1, 0
        %v358 = vsel %vm326, 1, 0
        %v359 = vsel %vm327, 1, 0
        %v360 = vsel %vm328, 1, 0
        %v361 = vsel %vm329, 1, 0
        %v362 = vsel %vm330, 1, 0
        %v363 = vsel %vm331, 1, 0
        %v364 = vsel %vm332, 1, 0
        %v365 = vsel %vm333, 1, 0
        %v366 = vsel %vm334, 1, 0
        %v367 = vcvt.s32.f32 %v335
        %v368 = vcvt.s32.f32 %v336
        %v369 = vcvt.s32.f32 %v337
        %v370 = vcvt.s32.f32 %v338
        %v371 = vcvt.s32.f32 %v339
        %v372 = vcvt.s32.f32 %v340
        %v373 = vcvt.s32.f32 %v341
        %v374 = vcvt.s32.f32 %v342
        %v375 = vcvt.s32.f32 %v343
        %v376 = vcvt.s32.f32 %v344
        %v377 = vcvt.s32.f32 %v345
        %v378 = vcvt.s32.f32 %v346
        %v379 = vcvt.s32.f32 %v347
        %v380 = vcvt.s32.f32 %v348
        %v381 = vcvt.s32.f32 %v349
        %v382 = vcvt.s32.f32 %v350
        %v383 = vcvt.s32.f32 %v351
        %v384 = vcvt.s32.f32 %v352
        %v385 = vcvt.s32.f32 %v353
        %v386 = vcvt.s32.f32 %v354
        %v387 = vcvt.s32.f32 %v355
        %v388 = vcvt.s32.f32 %v356
        %v389 = vcvt.s32.f32 %v357
        %v390 = vcvt.s32.f32 %v358
        %v391 = vcvt.s32.f32 %v359
        %v392 = vcvt.s32.f32 %v360
        %v393 = vcvt.s32.f32 %v361
        %v394 = vcvt.s32.f32 %v362
        %v395 = vcvt.s32.f32 %v363
        %v396 = vcvt.s32.f32 %v364
        %v397 = vcvt.s32.f32 %v365
        %v398 = vcvt.s32.f32 %v366
        %v399 = vpack.c.bf16 %v368, %v367
        %v400 = vpack.c.bf16 %v370, %v369
        %v401 = vpack.c.bf16 %v372, %v371
        %v402 = vpack.c.bf16 %v374, %v373
        %v403 = vpack.c.bf16 %v376, %v375
        %v404 = vpack.c.bf16 %v378, %v377
        %v405 = vpack.c.bf16 %v380, %v379
        %v406 = vpack.c.bf16 %v382, %v381
        %v407 = vpack.c.bf16 %v384, %v383
        %v408 = vpack.c.bf16 %v386, %v385
        %v409 = vpack.c.bf16 %v388, %v387
        %v410 = vpack.c.bf16 %v390, %v389
        %v411 = vpack.c.bf16 %v392, %v391
        %v412 = vpack.c.bf16 %v394, %v393
        %v413 = vpack.c.bf16 %v396, %v395
        %v414 = vpack.c.bf16 %v398, %v397
        %v415 = vld [vmem:[%s1] sm:$0xf]
        %v416 = vld [vmem:[%s1 + $0x4] sm:$0xf]
        %v417 = vld [vmem:[%s1 + $0x8] sm:$0xf]
        %v418 = vld [vmem:[%s1 + $0xc] sm:$0xf]
        %v419 = vld [vmem:[%s2] sm:$0x1]
        %v421 = vlaneseq
        %v422 = vshrl.u32 %v421, 7
        %v423 = vsub.s32 0, %v422
        %v424 = vrot.slane %v419, %v423
        %v430 = vunpack.c.l.b16 %v415
        %v431 = vunpack.c.l.b16 %v416
        %v432 = vunpack.c.l.b16 %v417
        %v433 = vunpack.c.l.b16 %v418
        %v434 = vpack.c.b16 %v431, %v430
        %v435 = vpack.c.b16 %v433, %v432
        %vm438 = vcmask 261120
        %v440 = vsel %vm438, %v399, 0
        %v443 = vsel %vm438, %v400, 0
        %v446 = vsel %vm438, %v401, 0
        %v449 = vsel %vm438, %v402, 0
        %v452 = vsel %vm438, %v403, 0
        %v455 = vsel %vm438, %v404, 0
        %v458 = vsel %vm438, %v405, 0
        %v461 = vsel %vm438, %v406, 0
        %v464 = vsel %vm438, %v407, 0
        %v467 = vsel %vm438, %v408, 0
        %v470 = vsel %vm438, %v409, 0
        %v473 = vsel %vm438, %v410, 0
        %v476 = vsel %vm438, %v411, 0
        %v479 = vsel %vm438, %v412, 0
        %v482 = vsel %vm438, %v413, 0
        %v485 = vsel %vm438, %v414, 0
        %487 = vmatprep.subr.bf16.mxu0 0
        %488 = vmatpush1.bf16.msra.mxu0 0
        %489 = vmatprep.subr.bf16.mxu0 0
        %490 = vmatpush1.bf16.msra.mxu0 0
        %491 = vmatprep.subr.bf16.mxu0 0
        %492 = vmatpush1.bf16.msra.mxu0 0
        %493 = vmatprep.subr.bf16.mxu0 0
        %494 = vmatpush1.bf16.msra.mxu0 0
        %495 = vmatprep.subr.bf16.mxu0 0
        %496 = vmatpush1.bf16.msra.mxu0 0
        %497 = vmatprep.subr.bf16.mxu0 0
        %498 = vmatpush1.bf16.msra.mxu0 0
        %499 = vmatprep.subr.bf16.mxu0 0
        %500 = vmatpush1.bf16.msra.mxu0 %v435
        %501 = vmatprep.subr.bf16.mxu0 0
        %502 = vmatpush1.bf16.msra.mxu0 %v434
        %503 = vmatprep.subr.bf16.mxu0 0
        %504 = vmatpush2.bf16.msra.mxu0 0
        %505 = vmatprep.subr.bf16.mxu0 0
        %506 = vmatpush2.bf16.msra.mxu0 0
        %507 = vmatprep.subr.bf16.mxu0 0
        %508 = vmatpush2.bf16.msra.mxu0 0
        %509 = vmatprep.subr.bf16.mxu0 0
        %510 = vmatpush2.bf16.msra.mxu0 0
        %511 = vmatprep.subr.bf16.mxu0 0
        %512 = vmatpush2.bf16.msra.mxu0 0
        %513 = vmatprep.subr.bf16.mxu0 0
        %514 = vmatpush2.bf16.msra.mxu0 0
        %515 = vmatprep.subr.bf16.mxu0 0
        %516 = vmatpush2.bf16.msra.mxu0 0
        %517 = vmatprep.subr.bf16.mxu0 0
        %518 = vmatpush2.bf16.msra.mxu0 0
        %519 = vmatprep.mubr.bf16.mxu0 0
        %520 = vmatmul.mubr.bf16.gmra.mxu0 %v440
        %v521 = vpop.f32.mrf.mxu0
        %v522 = vadd.f32 %v424, %v521
        %v523 = vpop.f32.mrf.mxu0
        %v524 = vpop.f32.mrf.mxu0
        %v525 = vadd.f32 %v424, %v524
        %v526 = vpop.f32.mrf.mxu0
        %527 = vmatprep.mubr.bf16.mxu0 0
        %528 = vmatmul.mubr.bf16.gmra.mxu0 %v443
        %v529 = vpop.f32.mrf.mxu0
        %v530 = vadd.f32 %v424, %v529
        %v531 = vpop.f32.mrf.mxu0
        %v532 = vpop.f32.mrf.mxu0
        %v533 = vadd.f32 %v424, %v532
        %v534 = vpop.f32.mrf.mxu0
        %535 = vmatprep.mubr.bf16.mxu0 0
        %536 = vmatmul.mubr.bf16.gmra.mxu0 %v446
        %v537 = vpop.f32.mrf.mxu0
        %v538 = vadd.f32 %v424, %v537
        %v539 = vpop.f32.mrf.mxu0
        %v540 = vpop.f32.mrf.mxu0
        %v541 = vadd.f32 %v424, %v540
        %v542 = vpop.f32.mrf.mxu0
        %543 = vmatprep.mubr.bf16.mxu0 0
        %544 = vmatmul.mubr.bf16.gmra.mxu0 %v449
        %v545 = vpop.f32.mrf.mxu0
        %v546 = vadd.f32 %v424, %v545
        %v547 = vpop.f32.mrf.mxu0
        %v548 = vpop.f32.mrf.mxu0
        %v549 = vadd.f32 %v424, %v548
        %v550 = vpop.f32.mrf.mxu0
        %551 = vmatprep.mubr.bf16.mxu0 0
        %552 = vmatmul.mubr.bf16.gmra.mxu0 %v452
        %v553 = vpop.f32.mrf.mxu0
        %v554 = vadd.f32 %v424, %v553
        %v555 = vpop.f32.mrf.mxu0
        %v556 = vpop.f32.mrf.mxu0
        %v557 = vadd.f32 %v424, %v556
        %v558 = vpop.f32.mrf.mxu0
        %559 = vmatprep.mubr.bf16.mxu0 0
        %560 = vmatmul.mubr.bf16.gmra.mxu0 %v455
        %v561 = vpop.f32.mrf.mxu0
        %v562 = vadd.f32 %v424, %v561
        %v563 = vpop.f32.mrf.mxu0
        %v564 = vpop.f32.mrf.mxu0
        %v565 = vadd.f32 %v424, %v564
        %v566 = vpop.f32.mrf.mxu0
        %567 = vmatprep.mubr.bf16.mxu0 0
        %568 = vmatmul.mubr.bf16.gmra.mxu0 %v458
        %v569 = vpop.f32.mrf.mxu0
        %v570 = vadd.f32 %v424, %v569
        %v571 = vpop.f32.mrf.mxu0
        %v572 = vpop.f32.mrf.mxu0
        %v573 = vadd.f32 %v424, %v572
        %v574 = vpop.f32.mrf.mxu0
        %575 = vmatprep.mubr.bf16.mxu0 0
        %576 = vmatmul.mubr.bf16.gmra.mxu0 %v461
        %v577 = vpop.f32.mrf.mxu0
        %v578 = vadd.f32 %v424, %v577
        %v579 = vpop.f32.mrf.mxu0
        %v580 = vpop.f32.mrf.mxu0
        %v581 = vadd.f32 %v424, %v580
        %v582 = vpop.f32.mrf.mxu0
        %583 = vmatprep.mubr.bf16.mxu0 0
        %584 = vmatmul.mubr.bf16.gmra.mxu0 %v464
        %v585 = vpop.f32.mrf.mxu0
        %v586 = vadd.f32 %v424, %v585
        %v587 = vpop.f32.mrf.mxu0
        %v588 = vpop.f32.mrf.mxu0
        %v589 = vadd.f32 %v424, %v588
        %v590 = vpop.f32.mrf.mxu0
        %591 = vmatprep.mubr.bf16.mxu0 0
        %592 = vmatmul.mubr.bf16.gmra.mxu0 %v467
        %v593 = vpop.f32.mrf.mxu0
        %v594 = vadd.f32 %v424, %v593
        %v595 = vpop.f32.mrf.mxu0
        %v596 = vpop.f32.mrf.mxu0
        %v597 = vadd.f32 %v424, %v596
        %v598 = vpop.f32.mrf.mxu0
        %599 = vmatprep.mubr.bf16.mxu0 0
        %600 = vmatmul.mubr.bf16.gmra.mxu0 %v470
        %v601 = vpop.f32.mrf.mxu0
        %v602 = vadd.f32 %v424, %v601
        %v603 = vpop.f32.mrf.mxu0
        %v604 = vpop.f32.mrf.mxu0
        %v605 = vadd.f32 %v424, %v604
        %v606 = vpop.f32.mrf.mxu0
        %607 = vmatprep.mubr.bf16.mxu0 0
        %608 = vmatmul.mubr.bf16.gmra.mxu0 %v473
        %v609 = vpop.f32.mrf.mxu0
        %v610 = vadd.f32 %v424, %v609
        %v611 = vpop.f32.mrf.mxu0
        %v612 = vpop.f32.mrf.mxu0
        %v613 = vadd.f32 %v424, %v612
        %v614 = vpop.f32.mrf.mxu0
        %615 = vmatprep.mubr.bf16.mxu0 0
        %616 = vmatmul.mubr.bf16.gmra.mxu0 %v476
        %v617 = vpop.f32.mrf.mxu0
        %v618 = vadd.f32 %v424, %v617
        %v619 = vpop.f32.mrf.mxu0
        %v620 = vpop.f32.mrf.mxu0
        %v621 = vadd.f32 %v424, %v620
        %v622 = vpop.f32.mrf.mxu0
        %623 = vmatprep.mubr.bf16.mxu0 0
        %624 = vmatmul.mubr.bf16.gmra.mxu0 %v479
        %v625 = vpop.f32.mrf.mxu0
        %v626 = vadd.f32 %v424, %v625
        %v627 = vpop.f32.mrf.mxu0
        %v628 = vpop.f32.mrf.mxu0
        %v629 = vadd.f32 %v424, %v628
        %v630 = vpop.f32.mrf.mxu0
        %631 = vmatprep.mubr.bf16.mxu0 0
        %632 = vmatmul.mubr.bf16.gmra.mxu0 %v482
        %v633 = vpop.f32.mrf.mxu0
        %v634 = vadd.f32 %v424, %v633
        %v635 = vpop.f32.mrf.mxu0
        %v636 = vpop.f32.mrf.mxu0
        %v637 = vadd.f32 %v424, %v636
        %v638 = vpop.f32.mrf.mxu0
        %639 = vmatprep.mubr.bf16.mxu0 0
        %640 = vmatmul.mubr.bf16.gmra.mxu0 %v485
        %v641 = vpop.f32.mrf.mxu0
        %v642 = vadd.f32 %v424, %v641
        %v643 = vpop.f32.mrf.mxu0
        %v644 = vpop.f32.mrf.mxu0
        %v645 = vadd.f32 %v424, %v644
        %v646 = vpop.f32.mrf.mxu0
        %647 = vdwg.mxu0
        %648 = vst [vmem:[%s164] sm:$0xff] %v522
        %649 = vst [vmem:[%s164 + $0x8] sm:$0xff] %v525
        %650 = vst [vmem:[%s164 + $0x10] sm:$0xff] %v530
        %651 = vst [vmem:[%s164 + $0x18] sm:$0xff] %v533
        %652 = vst [vmem:[%s164 + $0x20] sm:$0xff] %v538
        %653 = vst [vmem:[%s164 + $0x28] sm:$0xff] %v541
        %654 = vst [vmem:[%s164 + $0x30] sm:$0xff] %v546
        %655 = vst [vmem:[%s164 + $0x38] sm:$0xff] %v549
        %656 = vst [vmem:[%s164 + $0x40] sm:$0xff] %v554
        %657 = vst [vmem:[%s164 + $0x48] sm:$0xff] %v557
        %658 = vst [vmem:[%s164 + $0x50] sm:$0xff] %v562
        %659 = vst [vmem:[%s164 + $0x58] sm:$0xff] %v565
        %660 = vst [vmem:[%s164 + $0x60] sm:$0xff] %v570
        %661 = vst [vmem:[%s164 + $0x68] sm:$0xff] %v573
        %662 = vst [vmem:[%s164 + $0x70] sm:$0xff] %v578
        %663 = vst [vmem:[%s164 + $0x78] sm:$0xff] %v581
        %664 = vst [vmem:[%s164 + $0x80] sm:$0xff] %v586
        %665 = vst [vmem:[%s164 + $0x88] sm:$0xff] %v589
        %666 = vst [vmem:[%s164 + $0x90] sm:$0xff] %v594
        %667 = vst [vmem:[%s164 + $0x98] sm:$0xff] %v597
        %668 = vst [vmem:[%s164 + $0xa0] sm:$0xff] %v602
        %669 = vst [vmem:[%s164 + $0xa8] sm:$0xff] %v605
        %670 = vst [vmem:[%s164 + $0xb0] sm:$0xff] %v610
        %671 = vst [vmem:[%s164 + $0xb8] sm:$0xff] %v613
        %672 = vst [vmem:[%s164 + $0xc0] sm:$0xff] %v618
        %673 = vst [vmem:[%s164 + $0xc8] sm:$0xff] %v621
        %674 = vst [vmem:[%s164 + $0xd0] sm:$0xff] %v626
        %675 = vst [vmem:[%s164 + $0xd8] sm:$0xff] %v629
        %676 = vst [vmem:[%s164 + $0xe0] sm:$0xff] %v634
        %677 = vst [vmem:[%s164 + $0xe8] sm:$0xff] %v637
        %678 = vst [vmem:[%s164 + $0xf0] sm:$0xff] %v642
        %679 = vst [vmem:[%s164 + $0xf8] sm:$0xff] %v645
        %s680 = sand.u32 %s93, 1
        %s681 = scalar_lea.sflag [#allocation3], %s680
        %s682 = sand.u32 %s93, 1
        %s683 = smul.addr %s682, 256
        %s684 = scalar_lea.vmem [#allocation2], %s683
        // Predicated region
        $region33: #{tpu_custom_call.1} parent=31 // pred_check
          %p685 = pneg %p103
        $region34: #{tpu_custom_call.1} parent=31 // pred_check_branch
          %687 = sbr.rel (%p685) target = $region36
        $region35: #{tpu_custom_call.1} parent=31 // pred_region
          %s688 = smul.u32 32, %s17
          %s690 = ssub.s32 4096, 4096
          %691 = vsyncadd %s681, %s690
          %s692 = smul.addr %s688, 128
          %s693 = scalar_lea.hbm %s3, %s692
          %s694 = sshll.u32 %s684, 4
          %s695 = int_to_ptr.vmem [resolvable:$true] %s694
          %700 = dma.vmem_to_hbm [thread:$0]  %s695, 4096, %s693, %s681, 128, 128, 8
        $region36: #{tpu_custom_call.1} parent=31 // pred_fallthru
          _
      $region32: #{tpu_custom_call.1} parent=5 // pred_fallthru
        _
      %p701 = scmp.le.s32.totalorder 2, %s12
      // Predicated region
      $region37: #{tpu_custom_call.1} parent=5 // pred_check
        %p702 = pneg %p701
      $region38: #{tpu_custom_call.1} parent=5 // pred_check_branch
        %704 = sbr.rel (%p702) target = $region40
      $region39: #{tpu_custom_call.1} parent=5 // pred_region
        %s705 = ssub.s32 %s12, 2
        // Predicated region
        $region41: #{tpu_custom_call.1} parent=39 // pred_check
          %p706 = pneg %p109
        $region42: #{tpu_custom_call.1} parent=39 // pred_check_branch
          %708 = sbr.rel (%p706) target = $region44
        $region43: #{tpu_custom_call.1} parent=39 // pred_region
          %s709 = sand.u32 %s94, 1
          %s710 = scalar_lea.sflag [#allocation3], %s709
          %s711 = sand.u32 %s94, 1
          %s712 = smul.addr %s711, 256
          %s713 = scalar_lea.vmem [#allocation2], %s712
          %714 = dma.done %s710, 4096
        $region44: #{tpu_custom_call.1} parent=39 // pred_fallthru
          _
      $region40: #{tpu_custom_call.1} parent=5 // pred_fallthru
        _
    $region6: #{tpu_custom_call.1} parent=1 // loop_footer
      %s16 = sadd.s32 1, %s12
    $region7: #{tpu_custom_call.1} parent=1 // loop_footer_branch
      %11 = sbr.rel target = $region3
    $region8: #{tpu_custom_call.1} parent=1 // loop_exit
      _
    %715 = vsyncpa [#allocation3], 1
    %s716 = scalar_lea.sflag [#allocation3], 1
    %717 = vsyncpa %s716, 1

</llo_original>
